<compile_context>
chip_gen: v7x
topology: tpu7x:2x2x1
jax: 0.10.0
libtpu: 0.0.40
codegen_flags: <defaults>
</compile_context>

<pallas_src>
import functools

import jax
import jax.numpy as jnp
from jax.experimental import pallas as pl
from jax.experimental.pallas import tpu as pltpu


# ----------------------------------------------------------------------------- #
# Fused per-spatial-tile kernel: SA -> CA -> GA -> HA -> residual
# ----------------------------------------------------------------------------- #
def _attention_kernel(main_ref, attn_ref, sca_ref, gab_ref,
                      wg1_ref, wg2_ref, gamw_ref, haw1_ref, haw2_ref,
                      bias_ref, out_ref):
    f32 = jnp.float32
    bf16 = jnp.bfloat16
    dot = functools.partial(jnp.dot, preferred_element_type=f32)
    relu = lambda v: jnp.maximum(v, 0.0)
    sig = jax.nn.sigmoid

    main = main_ref[0]            # (T, C)  f32
    attn = attn_ref[0]            # (T, C)  bf16
    s_ca = sca_ref[0]             # (1, C)  f32   hoisted CALayer gate
    ga_b = gab_ref[0]             # (1, C)  f32   hoisted GALayer effective bias

    rows, c = main.shape
    mid2 = wg1_ref.shape[1]       # 2 * mid
    mid = haw1_ref.shape[1]

    bias = bias_ref[...]          # (1, 3*mid + 2 + C) f32, static lane slices
    b_g1 = bias[:, 0:mid2]
    b_g2 = bias[:, mid2:mid2 + 2]
    b_h1 = bias[:, mid2 + 2:mid2 + 2 + mid]
    b_h2 = bias[:, mid2 + 2 + mid:mid2 + 2 + mid + c]

    # Fused SA gate + HA ga_conv gate (both consume `attn`):
    # one (C, 2*mid) matmul + one block-diagonal (2*mid, 2) matmul.
    h = relu(dot(attn, wg1_ref[...]) + b_g1)                      # (T, 2*mid) f32
    gates = sig(dot(h.astype(bf16), wg2_ref[...]) + b_g2)         # (T, 2)     f32
    s_sa = gates[:, 0:1]                                          # SALayer gate
    x2 = gates[:, 1:2]                                            # HALayer last channel

    # SALayer * CALayer (CA gate precomputed in the wrapper)
    x = main * s_sa * s_ca                                        # (T, C) f32

    # GALayer: concat([x, g]) @ W == x @ W_main + (g @ W_ga + b)  (second term hoisted)
    x = relu(dot(x.astype(bf16), gamw_ref[...]) + ga_b)           # (T, C) f32

    # HALayer main branch (C-1 channels, weight/bias padded to C lanes)
    tmp = relu(dot(x.astype(bf16), haw1_ref[...]) + b_h1)         # (T, mid)
    x1f = relu(dot(tmp.astype(bf16), haw2_ref[...]) + b_h2)       # (T, C); last col pad

    col = jax.lax.broadcasted_iota(jnp.int32, (rows, c), 1)
    x = jnp.where(col == c - 1, x2, x1f)                          # concat([x1, x2], C)

    # residual attention
    out_ref[0] = main + x


# ----------------------------------------------------------------------------- #
# Wrappers
# ----------------------------------------------------------------------------- #
def _pick_tile_hw(hw):
    for t in (2048, 1024, 512, 256, 128, 64, 32, 16, 8):
        if hw % t == 0:
            return t
    return hw


def attention_layer_nlc(main, attn, params, packed):
    """Channels-last entry point. main/attn: (B, H*W, C) float32."""
    B, HW, C = main.shape
    relu = lambda v: jnp.maximum(v, 0.0)
    sig = jax.nn.sigmoid
    p = params

    # ---- hoisted global-pool branch (tiny, f32) ---------------------------------
    pooled = jnp.mean(attn, axis=1, keepdims=True)                          # (B,1,C)
    s_ca = sig(relu(pooled @ p["ca_w1"] + p["ca_b1"]) @ p["ca_w2"] + p["ca_b2"])
    g = sig(relu(pooled @ p["ga_w1"] + p["ga_b1"]) @ p["ga_w2"] + p["ga_b2"])
    ga_bias = g @ p["ga_wy"] + p["ga_bg"]                                   # (B,1,C)

    attn_bf = attn.astype(jnp.bfloat16)     # matmul operand stream: half the bytes

    tile = _pick_tile_hw(HW)
    grid = (B, HW // tile)

    feat_spec = pl.BlockSpec((1, tile, C), lambda b, t: (b, t, 0))
    vec_spec = pl.BlockSpec((1, 1, C), lambda b, t: (b, 0, 0))
    wspec = lambda w: pl.BlockSpec(w.shape, lambda b, t: (0, 0))

    out = pl.pallas_call(
        _attention_kernel,
        out_shape=jax.ShapeDtypeStruct((B, HW, C), jnp.float32),
        grid_spec=pltpu.PrefetchScalarGridSpec(
            num_scalar_prefetch=0,
            grid=grid,
            in_specs=[feat_spec, feat_spec, vec_spec, vec_spec,
                      wspec(packed["wg1"]), wspec(packed["wg2"]),
                      wspec(packed["ga_wm"]), wspec(packed["ha_w1"]),
                      wspec(packed["ha_w2p"]), wspec(packed["bias"])],
            out_specs=feat_spec,
        ),
        compiler_params=pltpu.CompilerParams(
            dimension_semantics=("parallel", "parallel"),
            vmem_limit_bytes=32 * 1024 * 1024),
        input_output_aliases={0: 0},   # out = main + x, same shape/dtype/blocking
    )(main, attn_bf, s_ca, ga_bias,
      packed["wg1"], packed["wg2"], packed["ga_wm"],
      packed["ha_w1"], packed["ha_w2p"], packed["bias"])
    return out


@jax.jit
def attention_layer_nchw(x_nchw, y_nchw, params, packed):
    # NOTE: in a channels-last model these transposes disappear entirely; they only
    # exist here to match the PyTorch NCHW interface.
    B, C, H, W = x_nchw.shape
    main = jnp.transpose(x_nchw, (0, 2, 3, 1)).reshape(B, H * W, C)
    attn = jnp.transpose(y_nchw, (0, 2, 3, 1)).reshape(B, H * W, C)
    out = attention_layer_nlc(main, attn, params, packed)
    return jnp.transpose(out.reshape(B, H, W, C), (0, 3, 1, 2))


# ----------------------------------------------------------------------------- #
# Deterministic parameter construction (kaiming-normal fan_out, small biases)
# ----------------------------------------------------------------------------- #
def _make_conv(key, cin, cout):
    kw, kb = jax.random.split(key)
    std = (2.0 / cout) ** 0.5                       # kaiming_normal_, fan_out, relu
    w = jax.random.normal(kw, (cin, cout), jnp.float32) * std   # stored as (Cin, Cout)
    b = jax.random.normal(kb, (1, cout), jnp.float32) * 0.01
    return w, b


def make_params(main_c, ga_c=32, ha_ga_c=1, reduction=16, seed=0):
    mid = max(8, main_c // reduction)
    keys = jax.random.split(jax.random.PRNGKey(seed), 12)
    p = {}
    p["sa_w1"], p["sa_b1"] = _make_conv(keys[0], main_c, mid)
    p["sa_w2"], p["sa_b2"] = _make_conv(keys[1], mid, 1)
    p["ca_w1"], p["ca_b1"] = _make_conv(keys[2], main_c, mid)
    p["ca_w2"], p["ca_b2"] = _make_conv(keys[3], mid, main_c)
    p["ga_w1"], p["ga_b1"] = _make_conv(keys[4], main_c, mid)
    p["ga_w2"], p["ga_b2"] = _make_conv(keys[5], mid, ga_c)
    # GA ga_conv weight (Cin = main_c + ga_c, Cout = main_c), split into two halves
    p["ga_wm"], p["ga_bg"] = _make_conv(keys[6], main_c, main_c)
    p["ga_wy"], _ = _make_conv(keys[7], ga_c, main_c)
    p["ha_w1"], p["ha_b1"] = _make_conv(keys[8], main_c, mid)
    p["ha_w2"], p["ha_b2"] = _make_conv(keys[9], mid, main_c - ha_ga_c)
    p["ha_gw1"], p["ha_gb1"] = _make_conv(keys[10], main_c, mid)
    p["ha_gw2"], p["ha_gb2"] = _make_conv(keys[11], mid, ha_ga_c)
    return p


def pack_params_for_kernel(p):
    """Fuse attn-branch gate weights, pack biases, cast matmul weights to bf16."""
    c, mid = p["sa_w1"].shape
    bf16 = jnp.bfloat16
    # fused attn-branch first layer: [SA | HA-gate]
    wg1 = jnp.concatenate([p["sa_w1"], p["ha_gw1"]], axis=1)               # (C, 2*mid)
    # fused second layer, block-diagonal: column 0 = SA gate, column 1 = HA gate
    wg2 = jnp.zeros((2 * mid, 2), jnp.float32)
    wg2 = wg2.at[:mid, 0:1].set(p["sa_w2"])
    wg2 = wg2.at[mid:, 1:2].set(p["ha_gw2"])
    # HA main-branch second conv padded from C-1 -> C output lanes
    ha_w2p = jnp.pad(p["ha_w2"], ((0, 0), (0, 1)))                         # (mid, C)
    # all in-kernel biases packed into one lane vector (static slices in kernel):
    # [sa_b1 | ha_gb1 | sa_b2 | ha_gb2 | ha_b1 | ha_b2(padded)]
    bias = jnp.concatenate(
        [p["sa_b1"], p["ha_gb1"], p["sa_b2"], p["ha_gb2"],
         p["ha_b1"], jnp.pad(p["ha_b2"], ((0, 0), (0, 1)))], axis=1)       # (1, 3m+2+C)
    return {
        "wg1": wg1.astype(bf16),
        "wg2": wg2.astype(bf16),
        "ga_wm": p["ga_wm"].astype(bf16),
        "ha_w1": p["ha_w1"].astype(bf16),
        "ha_w2p": ha_w2p.astype(bf16),
        "bias": bias.astype(jnp.float32),
    }


# ----------------------------------------------------------------------------- #
# References (channels-last)
# ----------------------------------------------------------------------------- #
def ref_forward_nlc(main, attn, p):
    """Pure-f32 reference, faithful to the PyTorch forward."""
    relu = lambda v: jnp.maximum(v, 0.0)
    sig = jax.nn.sigmoid
    x = main
    s = sig(relu(attn @ p["sa_w1"] + p["sa_b1"]) @ p["sa_w2"] + p["sa_b2"])
    x = x * s
    pooled = jnp.mean(attn, axis=1, keepdims=True)
    s = sig(relu(pooled @ p["ca_w1"] + p["ca_b1"]) @ p["ca_w2"] + p["ca_b2"])
    x = x * s
    g = sig(relu(pooled @ p["ga_w1"] + p["ga_b1"]) @ p["ga_w2"] + p["ga_b2"])
    x = relu(x @ p["ga_wm"] + g @ p["ga_wy"] + p["ga_bg"])
    x1 = relu(relu(x @ p["ha_w1"] + p["ha_b1"]) @ p["ha_w2"] + p["ha_b2"])
    x2 = sig(relu(attn @ p["ha_gw1"] + p["ha_gb1"]) @ p["ha_gw2"] + p["ha_gb2"])
    x = jnp.concatenate([x1, x2], axis=-1)
    return main + x


def ref_forward_nlc_mirror(main, attn, p):
    """Reference mirroring the kernel's numerics (bf16 matmul operands, f32 acc,
    f32 global-pool branch) — used for the tight correctness check."""
    bf16 = jnp.bfloat16
    d = lambda a, w: jnp.dot(a.astype(bf16), w.astype(bf16),
                             preferred_element_type=jnp.float32)
    relu = lambda v: jnp.maximum(v, 0.0)
    sig = jax.nn.sigmoid
    pooled = jnp.mean(attn, axis=1, keepdims=True)
    s_ca = sig(relu(pooled @ p["ca_w1"] + p["ca_b1"]) @ p["ca_w2"] + p["ca_b2"])
    g = sig(relu(pooled @ p["ga_w1"] + p["ga_b1"]) @ p["ga_w2"] + p["ga_b2"])
    ga_b = g @ p["ga_wy"] + p["ga_bg"]
    s_sa = sig(d(relu(d(attn, p["sa_w1"]) + p["sa_b1"]), p["sa_w2"]) + p["sa_b2"])
    x2 = sig(d(relu(d(attn, p["ha_gw1"]) + p["ha_gb1"]), p["ha_gw2"]) + p["ha_gb2"])
    x = main * s_sa * s_ca
    x = relu(d(x, p["ga_wm"]) + ga_b)
    x1 = relu(d(relu(d(x, p["ha_w1"]) + p["ha_b1"]), p["ha_w2"]) + p["ha_b2"])
    x = jnp.concatenate([x1, x2], axis=-1)
    return main + x


# TODO(synk): 'd'/'p'/'q' (DUAL_Module / PAM_Module / CAM_Module) branches are only
# active when is_lr_layer=True and their definitions are not part of this module;
# with is_lr_layer=False the PyTorch forward skips them, which is what we model.

if __name__ == "__main__":
    B, C, H, W = 2, 16, 8, 8

    key = jax.random.PRNGKey(0)
    kx, ky = jax.random.split(key)
    x = jax.random.normal(kx, (B, C, H, W), jnp.float32)
    y = jax.random.normal(ky, (B, C, H, W), jnp.float32)

    params = make_params(main_c=C)
    packed = pack_params_for_kernel(params)

    out = attention_layer_nchw(x, y, params, packed)
    out = jax.block_until_ready(out)

    main_nlc = jnp.transpose(x, (0, 2, 3, 1)).reshape(B, H * W, C)
    attn_nlc = jnp.transpose(y, (0, 2, 3, 1)).reshape(B, H * W, C)

    ref_mirror = ref_forward_nlc_mirror(main_nlc, attn_nlc, params)
    ref_f32 = ref_forward_nlc(main_nlc, attn_nlc, params)
    ref_mirror_nchw = jnp.transpose(ref_mirror.reshape(B, H, W, C), (0, 3, 1, 2))
    ref_f32_nchw = jnp.transpose(ref_f32.reshape(B, H, W, C), (0, 3, 1, 2))

    assert out.shape == (B, C, H, W)
    # tight: kernel vs a reference with identical math (bf16-operand matmuls)
    assert jnp.allclose(out, ref_mirror_nchw, rtol=2e-3, atol=2e-3), (
        float(jnp.max(jnp.abs(out - ref_mirror_nchw))))
    # loose: faithfulness to the pure-f32 PyTorch forward at this scale
    assert jnp.allclose(out, ref_f32_nchw, rtol=1e-1, atol=1e-1), (
        float(jnp.max(jnp.abs(out - ref_f32_nchw))))

    print("KERNEL_OK")
</pallas_src>

<mosaic_0001>
module attributes {stable_mosaic.version = 11 : i64} {
  func.func @_attention_kernel(%arg0: i32, %arg1: i32, %arg2: memref<1x64x16xf32, #tpu.memory_space<vmem>>, %arg3: memref<1x64x16xbf16, #tpu.memory_space<vmem>>, %arg4: memref<1x1x16xf32, #tpu.memory_space<vmem>>, %arg5: memref<1x1x16xf32, #tpu.memory_space<vmem>>, %arg6: memref<16x16xbf16, #tpu.memory_space<vmem>>, %arg7: memref<16x2xbf16, #tpu.memory_space<vmem>>, %arg8: memref<16x16xbf16, #tpu.memory_space<vmem>>, %arg9: memref<16x8xbf16, #tpu.memory_space<vmem>>, %arg10: memref<8x16xbf16, #tpu.memory_space<vmem>>, %arg11: memref<1x42xf32, #tpu.memory_space<vmem>>, %arg12: memref<1x64x16xf32, #tpu.memory_space<vmem>>) attributes {dimension_semantics = [#tpu.dimension_semantics<parallel>, #tpu.dimension_semantics<parallel>], iteration_bounds = array<i64: 2, 1>, scalar_prefetch = 0 : i64, scratch_operands = 0 : i64, tpu.core_type = #tpu.core_type<tc>, window_params = [{transform_indices = @transform_0, window_bounds = array<i64: 1, 64, 16>}, {transform_indices = @transform_1, window_bounds = array<i64: 1, 64, 16>}, {transform_indices = @transform_2, window_bounds = array<i64: 1, 1, 16>}, {transform_indices = @transform_3, window_bounds = array<i64: 1, 1, 16>}, {pipeline_mode = #tpu.pipeline_mode<synchronous>, transform_indices = @transform_4, window_bounds = array<i64: 16, 16>}, {pipeline_mode = #tpu.pipeline_mode<synchronous>, transform_indices = @transform_5, window_bounds = array<i64: 16, 2>}, {pipeline_mode = #tpu.pipeline_mode<synchronous>, transform_indices = @transform_6, window_bounds = array<i64: 16, 16>}, {pipeline_mode = #tpu.pipeline_mode<synchronous>, transform_indices = @transform_7, window_bounds = array<i64: 16, 8>}, {pipeline_mode = #tpu.pipeline_mode<synchronous>, transform_indices = @transform_8, window_bounds = array<i64: 8, 16>}, {pipeline_mode = #tpu.pipeline_mode<synchronous>, transform_indices = @transform_9, window_bounds = array<i64: 1, 42>}, {transform_indices = @transform_10, window_bounds = array<i64: 1, 64, 16>}]} {
    %c0 = arith.constant 0 : index
    %c0_0 = arith.constant 0 : index
    %c0_1 = arith.constant 0 : index
    %0 = vector.load %arg2[%c0, %c0_0, %c0_1] : memref<1x64x16xf32, #tpu.memory_space<vmem>>, vector<1x64x16xf32>
    %1 = vector.shape_cast %0 : vector<1x64x16xf32> to vector<64x16xf32>
    %c0_2 = arith.constant 0 : index
    %c0_3 = arith.constant 0 : index
    %c0_4 = arith.constant 0 : index
    %2 = vector.load %arg3[%c0_2, %c0_3, %c0_4] : memref<1x64x16xbf16, #tpu.memory_space<vmem>>, vector<1x64x16xbf16>
    %3 = vector.shape_cast %2 : vector<1x64x16xbf16> to vector<64x16xbf16>
    %c0_5 = arith.constant 0 : index
    %c0_6 = arith.constant 0 : index
    %c0_7 = arith.constant 0 : index
    %4 = vector.load %arg4[%c0_5, %c0_6, %c0_7] : memref<1x1x16xf32, #tpu.memory_space<vmem>>, vector<1x1x16xf32>
    %5 = vector.shape_cast %4 : vector<1x1x16xf32> to vector<1x16xf32>
    %c0_8 = arith.constant 0 : index
    %c0_9 = arith.constant 0 : index
    %c0_10 = arith.constant 0 : index
    %6 = vector.load %arg5[%c0_8, %c0_9, %c0_10] : memref<1x1x16xf32, #tpu.memory_space<vmem>>, vector<1x1x16xf32>
    %7 = vector.shape_cast %6 : vector<1x1x16xf32> to vector<1x16xf32>
    %c0_11 = arith.constant 0 : index
    %c0_12 = arith.constant 0 : index
    %8 = vector.load %arg11[%c0_11, %c0_12] : memref<1x42xf32, #tpu.memory_space<vmem>>, vector<1x42xf32>
    %9 = vector.extract_strided_slice %8 {offsets = [0, 0], sizes = [1, 16], strides = [1, 1]} : vector<1x42xf32> to vector<1x16xf32>
    %10 = vector.extract_strided_slice %8 {offsets = [0, 16], sizes = [1, 2], strides = [1, 1]} : vector<1x42xf32> to vector<1x2xf32>
    %11 = vector.extract_strided_slice %8 {offsets = [0, 18], sizes = [1, 8], strides = [1, 1]} : vector<1x42xf32> to vector<1x8xf32>
    %12 = vector.extract_strided_slice %8 {offsets = [0, 26], sizes = [1, 16], strides = [1, 1]} : vector<1x42xf32> to vector<1x16xf32>
    %c0_13 = arith.constant 0 : index
    %c0_14 = arith.constant 0 : index
    %13 = vector.load %arg6[%c0_13, %c0_14] : memref<16x16xbf16, #tpu.memory_space<vmem>>, vector<16x16xbf16>
    %cst = arith.constant dense<0.000000e+00> : vector<64x16xf32>
    %14 = tpu.matmul %3, %13, %cst {dimension_numbers = #tpu.dot_dimension_numbers<[1], [0], [0], [1], [0, 0, 1, 1], [], []>} : vector<64x16xbf16>, vector<16x16xbf16>, vector<64x16xf32> -> vector<64x16xf32>
    %15 = vector.broadcast %9 : vector<1x16xf32> to vector<64x16xf32>
    %16 = arith.addf %14, %15 : vector<64x16xf32>
    %cst_15 = arith.constant 0.000000e+00 : f32
    %17 = vector.broadcast %cst_15 : f32 to vector<64x16xf32>
    %18 = arith.maximumf %16, %17 : vector<64x16xf32>
    %19 = arith.truncf %18 : vector<64x16xf32> to vector<64x16xbf16>
    %c0_16 = arith.constant 0 : index
    %c0_17 = arith.constant 0 : index
    %20 = vector.load %arg7[%c0_16, %c0_17] : memref<16x2xbf16, #tpu.memory_space<vmem>>, vector<16x2xbf16>
    %cst_18 = arith.constant dense<0.000000e+00> : vector<64x2xf32>
    %21 = tpu.matmul %19, %20, %cst_18 {dimension_numbers = #tpu.dot_dimension_numbers<[1], [0], [0], [1], [0, 0, 1, 1], [], []>} : vector<64x16xbf16>, vector<16x2xbf16>, vector<64x2xf32> -> vector<64x2xf32>
    %22 = vector.broadcast %10 : vector<1x2xf32> to vector<64x2xf32>
    %23 = arith.addf %21, %22 : vector<64x2xf32>
    %24 = arith.negf %23 : vector<64x2xf32>
    %25 = math.exp %24 : vector<64x2xf32>
    %cst_19 = arith.constant 1.000000e+00 : f32
    %26 = vector.broadcast %cst_19 : f32 to vector<64x2xf32>
    %27 = arith.addf %26, %25 : vector<64x2xf32>
    %28 = arith.divf %26, %27 : vector<64x2xf32>
    %29 = vector.extract_strided_slice %28 {offsets = [0, 0], sizes = [64, 1], strides = [1, 1]} : vector<64x2xf32> to vector<64x1xf32>
    %30 = vector.extract_strided_slice %28 {offsets = [0, 1], sizes = [64, 1], strides = [1, 1]} : vector<64x2xf32> to vector<64x1xf32>
    %31 = vector.broadcast %29 : vector<64x1xf32> to vector<64x16xf32>
    %32 = arith.mulf %1, %31 : vector<64x16xf32>
    %33 = vector.broadcast %5 : vector<1x16xf32> to vector<64x16xf32>
    %34 = arith.mulf %32, %33 : vector<64x16xf32>
    %35 = arith.truncf %34 : vector<64x16xf32> to vector<64x16xbf16>
    %c0_20 = arith.constant 0 : index
    %c0_21 = arith.constant 0 : index
    %36 = vector.load %arg8[%c0_20, %c0_21] : memref<16x16xbf16, #tpu.memory_space<vmem>>, vector<16x16xbf16>
    %cst_22 = arith.constant dense<0.000000e+00> : vector<64x16xf32>
    %37 = tpu.matmul %35, %36, %cst_22 {dimension_numbers = #tpu.dot_dimension_numbers<[1], [0], [0], [1], [0, 0, 1, 1], [], []>} : vector<64x16xbf16>, vector<16x16xbf16>, vector<64x16xf32> -> vector<64x16xf32>
    %38 = vector.broadcast %7 : vector<1x16xf32> to vector<64x16xf32>
    %39 = arith.addf %37, %38 : vector<64x16xf32>
    %cst_23 = arith.constant 0.000000e+00 : f32
    %40 = vector.broadcast %cst_23 : f32 to vector<64x16xf32>
    %41 = arith.maximumf %39, %40 : vector<64x16xf32>
    %42 = arith.truncf %41 : vector<64x16xf32> to vector<64x16xbf16>
    %c0_24 = arith.constant 0 : index
    %c0_25 = arith.constant 0 : index
    %43 = vector.load %arg9[%c0_24, %c0_25] : memref<16x8xbf16, #tpu.memory_space<vmem>>, vector<16x8xbf16>
    %cst_26 = arith.constant dense<0.000000e+00> : vector<64x8xf32>
    %44 = tpu.matmul %42, %43, %cst_26 {dimension_numbers = #tpu.dot_dimension_numbers<[1], [0], [0], [1], [0, 0, 1, 1], [], []>} : vector<64x16xbf16>, vector<16x8xbf16>, vector<64x8xf32> -> vector<64x8xf32>
    %45 = vector.broadcast %11 : vector<1x8xf32> to vector<64x8xf32>
    %46 = arith.addf %44, %45 : vector<64x8xf32>
    %cst_27 = arith.constant 0.000000e+00 : f32
    %47 = vector.broadcast %cst_27 : f32 to vector<64x8xf32>
    %48 = arith.maximumf %46, %47 : vector<64x8xf32>
    %49 = arith.truncf %48 : vector<64x8xf32> to vector<64x8xbf16>
    %c0_28 = arith.constant 0 : index
    %c0_29 = arith.constant 0 : index
    %50 = vector.load %arg10[%c0_28, %c0_29] : memref<8x16xbf16, #tpu.memory_space<vmem>>, vector<8x16xbf16>
    %cst_30 = arith.constant dense<0.000000e+00> : vector<64x16xf32>
    %51 = tpu.matmul %49, %50, %cst_30 {dimension_numbers = #tpu.dot_dimension_numbers<[1], [0], [0], [1], [0, 0, 1, 1], [], []>} : vector<64x8xbf16>, vector<8x16xbf16>, vector<64x16xf32> -> vector<64x16xf32>
    %52 = vector.broadcast %12 : vector<1x16xf32> to vector<64x16xf32>
    %53 = arith.addf %51, %52 : vector<64x16xf32>
    %cst_31 = arith.constant 0.000000e+00 : f32
    %54 = vector.broadcast %cst_31 : f32 to vector<64x16xf32>
    %55 = arith.maximumf %53, %54 : vector<64x16xf32>
    %56 = tpu.iota {dimensions = array<i32: 1>} : vector<64x16xi32>
    %c15_i32 = arith.constant 15 : i32
    %57 = vector.broadcast %c15_i32 : i32 to vector<64x16xi32>
    %58 = arith.cmpi eq, %56, %57 : vector<64x16xi32>
    %59 = vector.shape_cast %30 : vector<64x1xf32> to vector<64x1xf32>
    %60 = vector.broadcast %59 : vector<64x1xf32> to vector<64x16xf32>
    %61 = arith.select %58, %60, %55 : vector<64x16xi1>, vector<64x16xf32>
    %62 = arith.addf %1, %61 : vector<64x16xf32>
    %c0_32 = arith.constant 0 : index
    %c0_33 = arith.constant 0 : index
    %c0_34 = arith.constant 0 : index
    %63 = vector.load %arg12[%c0_32, %c0_33, %c0_34] : memref<1x64x16xf32, #tpu.memory_space<vmem>>, vector<1x64x16xf32>
    %64 = vector.shape_cast %63 : vector<1x64x16xf32> to vector<64x16xf32>
    %65 = vector.shape_cast %62 : vector<64x16xf32> to vector<1x64x16xf32>
    tpu.vector_store %arg12[%c0_32, %c0_33, %c0_34], %65 {strides = array<i32>} : memref<1x64x16xf32, #tpu.memory_space<vmem>>, vector<1x64x16xf32>,
    return
  }
  func.func @transform_0(%arg0: i32, %arg1: i32) -> (i32, i32, i32) {
    %c0_i32 = arith.constant 0 : i32
    %c0_i32_0 = arith.constant 0 : i32
    return %arg0, %arg1, %c0_i32 : i32, i32, i32
  }
  func.func @transform_1(%arg0: i32, %arg1: i32) -> (i32, i32, i32) {
    %c0_i32 = arith.constant 0 : i32
    %c0_i32_0 = arith.constant 0 : i32
    return %arg0, %arg1, %c0_i32 : i32, i32, i32
  }
  func.func @transform_2(%arg0: i32, %arg1: i32) -> (i32, i32, i32) {
    %c0_i32 = arith.constant 0 : i32
    %c0_i32_0 = arith.constant 0 : i32
    %c0_i32_1 = arith.constant 0 : i32
    return %arg0, %c0_i32, %c0_i32_0 : i32, i32, i32
  }
  func.func @transform_3(%arg0: i32, %arg1: i32) -> (i32, i32, i32) {
    %c0_i32 = arith.constant 0 : i32
    %c0_i32_0 = arith.constant 0 : i32
    %c0_i32_1 = arith.constant 0 : i32
    return %arg0, %c0_i32, %c0_i32_0 : i32, i32, i32
  }
  func.func @transform_4(%arg0: i32, %arg1: i32) -> (i32, i32) {
    %c0_i32 = arith.constant 0 : i32
    %c0_i32_0 = arith.constant 0 : i32
    %c0_i32_1 = arith.constant 0 : i32
    return %c0_i32, %c0_i32_0 : i32, i32
  }
  func.func @transform_5(%arg0: i32, %arg1: i32) -> (i32, i32) {
    %c0_i32 = arith.constant 0 : i32
    %c0_i32_0 = arith.constant 0 : i32
    %c0_i32_1 = arith.constant 0 : i32
    return %c0_i32, %c0_i32_0 : i32, i32
  }
  func.func @transform_6(%arg0: i32, %arg1: i32) -> (i32, i32) {
    %c0_i32 = arith.constant 0 : i32
    %c0_i32_0 = arith.constant 0 : i32
    %c0_i32_1 = arith.constant 0 : i32
    return %c0_i32, %c0_i32_0 : i32, i32
  }
  func.func @transform_7(%arg0: i32, %arg1: i32) -> (i32, i32) {
    %c0_i32 = arith.constant 0 : i32
    %c0_i32_0 = arith.constant 0 : i32
    %c0_i32_1 = arith.constant 0 : i32
    return %c0_i32, %c0_i32_0 : i32, i32
  }
  func.func @transform_8(%arg0: i32, %arg1: i32) -> (i32, i32) {
    %c0_i32 = arith.constant 0 : i32
    %c0_i32_0 = arith.constant 0 : i32
    %c0_i32_1 = arith.constant 0 : i32
    return %c0_i32, %c0_i32_0 : i32, i32
  }
  func.func @transform_9(%arg0: i32, %arg1: i32) -> (i32, i32) {
    %c0_i32 = arith.constant 0 : i32
    %c0_i32_0 = arith.constant 0 : i32
    %c0_i32_1 = arith.constant 0 : i32
    return %c0_i32, %c0_i32_0 : i32, i32
  }
  func.func @transform_10(%arg0: i32, %arg1: i32) -> (i32, i32, i32) {
    %c0_i32 = arith.constant 0 : i32
    %c0_i32_0 = arith.constant 0 : i32
    return %arg0, %arg1, %c0_i32 : i32, i32, i32
  }
}

</mosaic_0001>

<llo_original>
// kernel: attention_layer_nchw.1
$region0: #{attention_layer_nchw.1}
  #allocation0 [shape = 'u32[]', space=smem, size = 0x4, offset = 0x4, fixed_abs, tag = 'smem constant byte address 0x4 - core index']
  #allocation1 [shape = 'u32[144,128]{1,0:T(1,128)}', space=vmem, size = 0x12000, scoped, tag = 'internal scratch']
  %s0 = inlined_call_operand.vmem [shape: f32[2,64,16], index: 0, kind: input, shape index: {}, may-alias: {0,10}]
  %s1 = inlined_call_operand.vmem [shape: bf16[2,64,16], index: 1, kind: input, shape index: {}]
  %s2 = inlined_call_operand.vmem [shape: f32[2,1,16], index: 2, kind: input, shape index: {}]
  %s3 = inlined_call_operand.vmem [shape: f32[2,1,16], index: 3, kind: input, shape index: {}]
  %s4 = inlined_call_operand.vmem [shape: bf16[16,16], index: 4, kind: input, shape index: {}]
  %s5 = inlined_call_operand.vmem [shape: bf16[16,2], index: 5, kind: input, shape index: {}]
  %s6 = inlined_call_operand.vmem [shape: bf16[16,16], index: 6, kind: input, shape index: {}]
  %s7 = inlined_call_operand.vmem [shape: bf16[16,8], index: 7, kind: input, shape index: {}]
  %s8 = inlined_call_operand.vmem [shape: bf16[8,16], index: 8, kind: input, shape index: {}]
  %s9 = inlined_call_operand.vmem [shape: f32[1,42], index: 9, kind: input, shape index: {}]
  %s10 = inlined_call_operand.vmem [shape: f32[2,64,16], index: 10, kind: output, shape index: {}, may-alias: {0,10}]
  %s11 = sld [smem:[#allocation0]]
  $region73: #{attention_layer_nchw.1} parent=0
    _
  %s13 = ssub.s32 1, %s11
  %s14 = scalar_select 0, %s13, %s11
  loop: start=0, step=1, limit=4
  $region2: #{attention_layer_nchw.1} parent=0 // loop_pre_header
    _
  $region3: #{attention_layer_nchw.1} parent=0 // loop_header
    %s16 = sphi 0, %s20
    %p17 = scmp.ge.s32.totalorder %s16, 4
    %s23 = sphi 0, %s35
    %s24 = sphi 0, %s31
    %s25 = sphi 0, %s23
    %s26 = sphi 0, %s24
    %s27 = sphi 0, %s25
    %s28 = sphi 0, %s26
    %s40 = sphi 0, %s42
    %s43 = sphi 0, %s40
    %s44 = sphi 0, %s43
    %s60 = sphi 0, %s44
    %s68 = sphi 0, %s70
    %s71 = sphi 0, %s68
    %s72 = sphi 0, %s71
    %s88 = sphi 0, %s72
    %s94 = sphi 0, %s96
    %s97 = sphi 0, %s94
    %s98 = sphi 0, %s97
    %s114 = sphi 0, %s98
    %s120 = sphi 0, %s122
    %s123 = sphi 0, %s120
    %s124 = sphi 0, %s123
    %s140 = sphi 0, %s124
    %s144 = sphi 0, %s144
    %s146 = sphi 0, %s144
    %s147 = sphi 0, %s146
    %s161 = sphi 0, %s147
    %s165 = sphi 0, %s165
    %s167 = sphi 0, %s165
    %s168 = sphi 0, %s167
    %s182 = sphi 0, %s168
    %s186 = sphi 0, %s186
    %s188 = sphi 0, %s186
    %s189 = sphi 0, %s188
    %s203 = sphi 0, %s189
    %s207 = sphi 0, %s207
    %s209 = sphi 0, %s207
    %s210 = sphi 0, %s209
    %s224 = sphi 0, %s210
    %s228 = sphi 0, %s228
    %s230 = sphi 0, %s228
    %s231 = sphi 0, %s230
    %s245 = sphi 0, %s231
    %s249 = sphi 0, %s249
    %s251 = sphi 0, %s249
    %s252 = sphi 0, %s251
    %s266 = sphi 0, %s252
    %s274 = sphi 0, %s276
    %s277 = sphi 0, %s274
    %s278 = sphi 0, %s277
    %s294 = sphi 0, %s278
  $region4: #{attention_layer_nchw.1} parent=0 // loop_header_branch
    %19 = sbr.rel (%p17) target = $region8
  $region5: #{attention_layer_nchw.1} parent=0 // loop_body
    %s21 = ssub.s32 %s16, 1
    %s22 = ssub.s32 %s16, 2
    %s29 = sadd.s32 1, %s24
    %p30 = scmp.ge.s32.totalorder %s29, 1
    %s31 = scalar_select %p30, 0, %s29
    %s32 = sadd.s32 1, %s23
    %s33 = scalar_select %p30, %s32, %s23
    %p34 = scmp.ge.s32.totalorder %s33, 2
    %s35 = scalar_select %p34, 0, %s33
    %s36 = ssub.s32 %s23, %s35
    %s37 = ssub.s32 %s24, %s31
    %s38 = sor.u32 %s36, %s37
    %p39 = scmp.eq.s32.totalorder %s38, 0
    %s41 = sadd.s32 %s40, 1
    %s42 = scalar_select %p39, %s40, %s41
    %p45 = pneg %p39
    %p46 = scmp.eq.s32.totalorder %s16, 1
    %p47 = por %p45, %p46
    %p48 = scmp.ne.s32.totalorder %s40, %s43
    %p49 = scmp.eq.s32.totalorder %s16, 0
    %p50 = por %p48, %p49
    %p51 = scmp.ne.s32.totalorder %s40, %s43
    %p52 = scmp.eq.s32.totalorder %s21, 1
    %p53 = por %p51, %p52
    %p54 = scmp.ne.s32.totalorder %s43, %s44
    %p55 = scmp.eq.s32.totalorder %s21, 0
    %p56 = por %p54, %p55
    %p57 = scmp.ne.s32.totalorder %s43, %s44
    %p58 = scmp.eq.s32.totalorder %s22, 1
    %p59 = por %p57, %p58
    %p61 = scmp.ne.s32.totalorder %s44, %s60
    %p62 = scmp.eq.s32.totalorder %s22, 0
    %p63 = por %p61, %p62
    %s64 = ssub.s32 %s23, %s35
    %s65 = ssub.s32 %s24, %s31
    %s66 = sor.u32 %s64, %s65
    %p67 = scmp.eq.s32.totalorder %s66, 0
    %s69 = sadd.s32 %s68, 1
    %s70 = scalar_select %p67, %s68, %s69
    %p73 = pneg %p67
    %p74 = scmp.eq.s32.totalorder %s16, 1
    %p75 = por %p73, %p74
    %p76 = scmp.ne.s32.totalorder %s68, %s71
    %p77 = scmp.eq.s32.totalorder %s16, 0
    %p78 = por %p76, %p77
    %p79 = scmp.ne.s32.totalorder %s68, %s71
    %p80 = scmp.eq.s32.totalorder %s21, 1
    %p81 = por %p79, %p80
    %p82 = scmp.ne.s32.totalorder %s71, %s72
    %p83 = scmp.eq.s32.totalorder %s21, 0
    %p84 = por %p82, %p83
    %p85 = scmp.ne.s32.totalorder %s71, %s72
    %p86 = scmp.eq.s32.totalorder %s22, 1
    %p87 = por %p85, %p86
    %p89 = scmp.ne.s32.totalorder %s72, %s88
    %p90 = scmp.eq.s32.totalorder %s22, 0
    %p91 = por %p89, %p90
    %s92 = ssub.s32 %s23, %s35
    %p93 = scmp.eq.s32.totalorder %s92, 0
    %s95 = sadd.s32 %s94, 1
    %s96 = scalar_select %p93, %s94, %s95
    %p99 = pneg %p93
    %p100 = scmp.eq.s32.totalorder %s16, 1
    %p101 = por %p99, %p100
    %p102 = scmp.ne.s32.totalorder %s94, %s97
    %p103 = scmp.eq.s32.totalorder %s16, 0
    %p104 = por %p102, %p103
    %p105 = scmp.ne.s32.totalorder %s94, %s97
    %p106 = scmp.eq.s32.totalorder %s21, 1
    %p107 = por %p105, %p106
    %p108 = scmp.ne.s32.totalorder %s97, %s98
    %p109 = scmp.eq.s32.totalorder %s21, 0
    %p110 = por %p108, %p109
    %p111 = scmp.ne.s32.totalorder %s97, %s98
    %p112 = scmp.eq.s32.totalorder %s22, 1
    %p113 = por %p111, %p112
    %p115 = scmp.ne.s32.totalorder %s98, %s114
    %p116 = scmp.eq.s32.totalorder %s22, 0
    %p117 = por %p115, %p116
    %s118 = ssub.s32 %s23, %s35
    %p119 = scmp.eq.s32.totalorder %s118, 0
    %s121 = sadd.s32 %s120, 1
    %s122 = scalar_select %p119, %s120, %s121
    %p125 = pneg %p119
    %p126 = scmp.eq.s32.totalorder %s16, 1
    %p127 = por %p125, %p126
    %p128 = scmp.ne.s32.totalorder %s120, %s123
    %p129 = scmp.eq.s32.totalorder %s16, 0
    %p130 = por %p128, %p129
    %p131 = scmp.ne.s32.totalorder %s120, %s123
    %p132 = scmp.eq.s32.totalorder %s21, 1
    %p133 = por %p131, %p132
    %p134 = scmp.ne.s32.totalorder %s123, %s124
    %p135 = scmp.eq.s32.totalorder %s21, 0
    %p136 = por %p134, %p135
    %p137 = scmp.ne.s32.totalorder %s123, %s124
    %p138 = scmp.eq.s32.totalorder %s22, 1
    %p139 = por %p137, %p138
    %p141 = scmp.ne.s32.totalorder %s124, %s140
    %p142 = scmp.eq.s32.totalorder %s22, 0
    %p143 = por %p141, %p142
    %s145 = sadd.s32 %s144, 1
    %p148 = scmp.eq.s32.totalorder %s16, 1
    %p149 = scmp.ne.s32.totalorder %s144, %s146
    %p150 = scmp.eq.s32.totalorder %s16, 0
    %p151 = por %p149, %p150
    %p152 = scmp.ne.s32.totalorder %s144, %s146
    %p153 = scmp.eq.s32.totalorder %s21, 1
    %p154 = por %p152, %p153
    %p155 = scmp.ne.s32.totalorder %s146, %s147
    %p156 = scmp.eq.s32.totalorder %s21, 0
    %p157 = por %p155, %p156
    %p158 = scmp.ne.s32.totalorder %s146, %s147
    %p159 = scmp.eq.s32.totalorder %s22, 1
    %p160 = por %p158, %p159
    %p162 = scmp.ne.s32.totalorder %s147, %s161
    %p163 = scmp.eq.s32.totalorder %s22, 0
    %p164 = por %p162, %p163
    %s166 = sadd.s32 %s165, 1
    %p169 = scmp.eq.s32.totalorder %s16, 1
    %p170 = scmp.ne.s32.totalorder %s165, %s167
    %p171 = scmp.eq.s32.totalorder %s16, 0
    %p172 = por %p170, %p171
    %p173 = scmp.ne.s32.totalorder %s165, %s167
    %p174 = scmp.eq.s32.totalorder %s21, 1
    %p175 = por %p173, %p174
    %p176 = scmp.ne.s32.totalorder %s167, %s168
    %p177 = scmp.eq.s32.totalorder %s21, 0
    %p178 = por %p176, %p177
    %p179 = scmp.ne.s32.totalorder %s167, %s168
    %p180 = scmp.eq.s32.totalorder %s22, 1
    %p181 = por %p179, %p180
    %p183 = scmp.ne.s32.totalorder %s168, %s182
    %p184 = scmp.eq.s32.totalorder %s22, 0
    %p185 = por %p183, %p184
    %s187 = sadd.s32 %s186, 1
    %p190 = scmp.eq.s32.totalorder %s16, 1
    %p191 = scmp.ne.s32.totalorder %s186, %s188
    %p192 = scmp.eq.s32.totalorder %s16, 0
    %p193 = por %p191, %p192
    %p194 = scmp.ne.s32.totalorder %s186, %s188
    %p195 = scmp.eq.s32.totalorder %s21, 1
    %p196 = por %p194, %p195
    %p197 = scmp.ne.s32.totalorder %s188, %s189
    %p198 = scmp.eq.s32.totalorder %s21, 0
    %p199 = por %p197, %p198
    %p200 = scmp.ne.s32.totalorder %s188, %s189
    %p201 = scmp.eq.s32.totalorder %s22, 1
    %p202 = por %p200, %p201
    %p204 = scmp.ne.s32.totalorder %s189, %s203
    %p205 = scmp.eq.s32.totalorder %s22, 0
    %p206 = por %p204, %p205
    %s208 = sadd.s32 %s207, 1
    %p211 = scmp.eq.s32.totalorder %s16, 1
    %p212 = scmp.ne.s32.totalorder %s207, %s209
    %p213 = scmp.eq.s32.totalorder %s16, 0
    %p214 = por %p212, %p213
    %p215 = scmp.ne.s32.totalorder %s207, %s209
    %p216 = scmp.eq.s32.totalorder %s21, 1
    %p217 = por %p215, %p216
    %p218 = scmp.ne.s32.totalorder %s209, %s210
    %p219 = scmp.eq.s32.totalorder %s21, 0
    %p220 = por %p218, %p219
    %p221 = scmp.ne.s32.totalorder %s209, %s210
    %p222 = scmp.eq.s32.totalorder %s22, 1
    %p223 = por %p221, %p222
    %p225 = scmp.ne.s32.totalorder %s210, %s224
    %p226 = scmp.eq.s32.totalorder %s22, 0
    %p227 = por %p225, %p226
    %s229 = sadd.s32 %s228, 1
    %p232 = scmp.eq.s32.totalorder %s16, 1
    %p233 = scmp.ne.s32.totalorder %s228, %s230
    %p234 = scmp.eq.s32.totalorder %s16, 0
    %p235 = por %p233, %p234
    %p236 = scmp.ne.s32.totalorder %s228, %s230
    %p237 = scmp.eq.s32.totalorder %s21, 1
    %p238 = por %p236, %p237
    %p239 = scmp.ne.s32.totalorder %s230, %s231
    %p240 = scmp.eq.s32.totalorder %s21, 0
    %p241 = por %p239, %p240
    %p242 = scmp.ne.s32.totalorder %s230, %s231
    %p243 = scmp.eq.s32.totalorder %s22, 1
    %p244 = por %p242, %p243
    %p246 = scmp.ne.s32.totalorder %s231, %s245
    %p247 = scmp.eq.s32.totalorder %s22, 0
    %p248 = por %p246, %p247
    %s250 = sadd.s32 %s249, 1
    %p253 = scmp.eq.s32.totalorder %s16, 1
    %p254 = scmp.ne.s32.totalorder %s249, %s251
    %p255 = scmp.eq.s32.totalorder %s16, 0
    %p256 = por %p254, %p255
    %p257 = scmp.ne.s32.totalorder %s249, %s251
    %p258 = scmp.eq.s32.totalorder %s21, 1
    %p259 = por %p257, %p258
    %p260 = scmp.ne.s32.totalorder %s251, %s252
    %p261 = scmp.eq.s32.totalorder %s21, 0
    %p262 = por %p260, %p261
    %p263 = scmp.ne.s32.totalorder %s251, %s252
    %p264 = scmp.eq.s32.totalorder %s22, 1
    %p265 = por %p263, %p264
    %p267 = scmp.ne.s32.totalorder %s252, %s266
    %p268 = scmp.eq.s32.totalorder %s22, 0
    %p269 = por %p267, %p268
    %s270 = ssub.s32 %s23, %s35
    %s271 = ssub.s32 %s24, %s31
    %s272 = sor.u32 %s270, %s271
    %p273 = scmp.eq.s32.totalorder %s272, 0
    %s275 = sadd.s32 %s274, 1
    %s276 = scalar_select %p273, %s274, %s275
    %p279 = pneg %p273
    %p280 = scmp.eq.s32.totalorder %s16, 1
    %p281 = por %p279, %p280
    %p282 = scmp.ne.s32.totalorder %s274, %s277
    %p283 = scmp.eq.s32.totalorder %s16, 0
    %p284 = por %p282, %p283
    %p285 = scmp.ne.s32.totalorder %s274, %s277
    %p286 = scmp.eq.s32.totalorder %s21, 1
    %p287 = por %p285, %p286
    %p288 = scmp.ne.s32.totalorder %s277, %s278
    %p289 = scmp.eq.s32.totalorder %s21, 0
    %p290 = por %p288, %p289
    %p291 = scmp.ne.s32.totalorder %s277, %s278
    %p292 = scmp.eq.s32.totalorder %s22, 1
    %p293 = por %p291, %p292
    %p295 = scmp.ne.s32.totalorder %s278, %s294
    %p296 = scmp.eq.s32.totalorder %s22, 0
    %p297 = por %p295, %p296
    %p298 = scmp.le.s32.totalorder 1, %s16
    %p299 = scmp.lt.s32.totalorder %s16, 3
    %p300 = pnand %p298, %p299
    %p301 = pneg %p300
    // Predicated region
    $region9: #{attention_layer_nchw.1} parent=5 // pred_check
      _
    $region10: #{attention_layer_nchw.1} parent=5 // pred_check_branch
      %303 = sbr.rel (%p300) target = $region12
    $region11: #{attention_layer_nchw.1} parent=5 // pred_region
      %s304 = ssub.s32 %s16, 1
      // Predicated region
      $region13: #{attention_layer_nchw.1} parent=11 // pred_check
        %p305 = pneg %p157
      $region14: #{attention_layer_nchw.1} parent=11 // pred_check_branch
        %307 = sbr.rel (%p305) target = $region16
      $region15: #{attention_layer_nchw.1} parent=11 // pred_region
        _
      $region16: #{attention_layer_nchw.1} parent=11 // pred_fallthru
        _
      // Predicated region
      $region17: #{attention_layer_nchw.1} parent=11 // pred_check
        %p308 = pneg %p178
      $region18: #{attention_layer_nchw.1} parent=11 // pred_check_branch
        %310 = sbr.rel (%p308) target = $region20
      $region19: #{attention_layer_nchw.1} parent=11 // pred_region
        _
      $region20: #{attention_layer_nchw.1} parent=11 // pred_fallthru
        _
      // Predicated region
      $region21: #{attention_layer_nchw.1} parent=11 // pred_check
        %p311 = pneg %p199
      $region22: #{attention_layer_nchw.1} parent=11 // pred_check_branch
        %313 = sbr.rel (%p311) target = $region24
      $region23: #{attention_layer_nchw.1} parent=11 // pred_region
        _
      $region24: #{attention_layer_nchw.1} parent=11 // pred_fallthru
        _
      // Predicated region
      $region25: #{attention_layer_nchw.1} parent=11 // pred_check
        %p314 = pneg %p220
      $region26: #{attention_layer_nchw.1} parent=11 // pred_check_branch
        %316 = sbr.rel (%p314) target = $region28
      $region27: #{attention_layer_nchw.1} parent=11 // pred_region
        _
      $region28: #{attention_layer_nchw.1} parent=11 // pred_fallthru
        _
      // Predicated region
      $region29: #{attention_layer_nchw.1} parent=11 // pred_check
        %p317 = pneg %p241
      $region30: #{attention_layer_nchw.1} parent=11 // pred_check_branch
        %319 = sbr.rel (%p317) target = $region32
      $region31: #{attention_layer_nchw.1} parent=11 // pred_region
        _
      $region32: #{attention_layer_nchw.1} parent=11 // pred_fallthru
        _
      // Predicated region
      $region33: #{attention_layer_nchw.1} parent=11 // pred_check
        %p320 = pneg %p262
      $region34: #{attention_layer_nchw.1} parent=11 // pred_check_branch
        %322 = sbr.rel (%p320) target = $region36
      $region35: #{attention_layer_nchw.1} parent=11 // pred_region
        _
      $region36: #{attention_layer_nchw.1} parent=11 // pred_fallthru
        _
    $region12: #{attention_layer_nchw.1} parent=5 // pred_fallthru
      _
    %p323 = scmp.lt.s32.totalorder %s16, 2
    // Predicated region
    $region37: #{attention_layer_nchw.1} parent=5 // pred_check
      %p324 = pneg %p323
    $region38: #{attention_layer_nchw.1} parent=5 // pred_check_branch
      %326 = sbr.rel (%p324) target = $region40
    $region39: #{attention_layer_nchw.1} parent=5 // pred_region
      // Predicated region
      $region41: #{attention_layer_nchw.1} parent=39 // pred_check
        %p327 = pneg %p50
      $region42: #{attention_layer_nchw.1} parent=39 // pred_check_branch
        %329 = sbr.rel (%p327) target = $region44
      $region43: #{attention_layer_nchw.1} parent=39 // pred_region
        %s330 = smul.u32 8, %s24
        %p331 = scmp.lt.s32.totalorder %s23, 1
        %s332 = scalar_select %p331, %s23, 1
        %p333 = scmp.lt.s32.totalorder %s330, 7
        %s334 = scalar_select %p333, %s330, 7
        %s335 = smul.addr %s332, 8
        %s336 = sadd.s32 %s334, %s335
        %s337 = smul.addr %s336, 8
        %s338 = scalar_lea.vmem %s0, %s337
        %s339 = smul.u32 8, %s24
      $region44: #{attention_layer_nchw.1} parent=39 // pred_fallthru
        _
      // Predicated region
      $region45: #{attention_layer_nchw.1} parent=39 // pred_check
        %p340 = pneg %p78
      $region46: #{attention_layer_nchw.1} parent=39 // pred_check_branch
        %342 = sbr.rel (%p340) target = $region48
      $region47: #{attention_layer_nchw.1} parent=39 // pred_region
        %s343 = smul.u32 8, %s24
        %p344 = scmp.lt.s32.totalorder %s23, 1
        %s345 = scalar_select %p344, %s23, 1
        %p346 = scmp.lt.s32.totalorder %s343, 7
        %s347 = scalar_select %p346, %s343, 7
        %s348 = smul.addr %s345, 8
        %s349 = sadd.s32 %s347, %s348
        %s350 = smul.addr %s349, 4
        %s351 = scalar_lea.vmem %s1, %s350
        %s352 = smul.u32 8, %s24
      $region48: #{attention_layer_nchw.1} parent=39 // pred_fallthru
        _
      // Predicated region
      $region49: #{attention_layer_nchw.1} parent=39 // pred_check
        %p353 = pneg %p104
      $region50: #{attention_layer_nchw.1} parent=39 // pred_check_branch
        %355 = sbr.rel (%p353) target = $region52
      $region51: #{attention_layer_nchw.1} parent=39 // pred_region
        %p356 = scmp.lt.s32.totalorder %s23, 1
        %s357 = scalar_select %p356, %s23, 1
        %s358 = scalar_lea.vmem %s2, %s357
      $region52: #{attention_layer_nchw.1} parent=39 // pred_fallthru
        _
      // Predicated region
      $region53: #{attention_layer_nchw.1} parent=39 // pred_check
        %p359 = pneg %p130
      $region54: #{attention_layer_nchw.1} parent=39 // pred_check_branch
        %361 = sbr.rel (%p359) target = $region56
      $region55: #{attention_layer_nchw.1} parent=39 // pred_region
        %p362 = scmp.lt.s32.totalorder %s23, 1
        %s363 = scalar_select %p362, %s23, 1
        %s364 = scalar_lea.vmem %s3, %s363
      $region56: #{attention_layer_nchw.1} parent=39 // pred_fallthru
        _
    $region40: #{attention_layer_nchw.1} parent=5 // pred_fallthru
      _
    %p365 = scmp.le.s32.totalorder 1, %s16
    %p366 = scmp.lt.s32.totalorder %s16, 3
    %p367 = pnand %p365, %p366
    %p368 = pneg %p367
    // Predicated region
    $region57: #{attention_layer_nchw.1} parent=5 // pred_check
      _
    $region58: #{attention_layer_nchw.1} parent=5 // pred_check_branch
      %370 = sbr.rel (%p367) target = $region60
    $region59: #{attention_layer_nchw.1} parent=5 // pred_region
      %s371 = ssub.s32 %s16, 1
      %s372 = smul.u32 8, %s26
      %p373 = scmp.lt.s32.totalorder %s25, 1
      %s374 = scalar_select %p373, %s25, 1
      %p375 = scmp.lt.s32.totalorder %s372, 7
      %s376 = scalar_select %p375, %s372, 7
      %s377 = smul.addr %s374, 8
      %s378 = sadd.s32 %s376, %s377
      %s379 = smul.addr %s378, 8
      %s380 = scalar_lea.vmem %s0, %s379
      %p381 = pneg %p56
      %p382 = pneg %p53
      %s383 = smul.u32 8, %s26
      %p384 = scmp.lt.s32.totalorder %s25, 1
      %s385 = scalar_select %p384, %s25, 1
      %p386 = scmp.lt.s32.totalorder %s383, 7
      %s387 = scalar_select %p386, %s383, 7
      %s388 = smul.addr %s385, 8
      %s389 = sadd.s32 %s387, %s388
      %s390 = smul.addr %s389, 4
      %s391 = scalar_lea.vmem %s1, %s390
      %p392 = pneg %p84
      %p393 = pneg %p81
      %p394 = scmp.lt.s32.totalorder %s25, 1
      %s395 = scalar_select %p394, %s25, 1
      %s396 = scalar_lea.vmem %s2, %s395
      %p397 = pneg %p110
      %p398 = pneg %p107
      %p399 = scmp.lt.s32.totalorder %s25, 1
      %s400 = scalar_select %p399, %s25, 1
      %s401 = scalar_lea.vmem %s3, %s400
      %p402 = pneg %p136
      %p403 = pneg %p133
      %p404 = pneg %p157
      %p405 = pneg %p154
      %p406 = pneg %p178
      %p407 = pneg %p175
      %p408 = pneg %p199
      %p409 = pneg %p196
      %p410 = pneg %p220
      %p411 = pneg %p217
      %p412 = pneg %p241
      %p413 = pneg %p238
      %p414 = pneg %p262
      %p415 = pneg %p259
      %p416 = pneg %p290
      %p417 = pneg %p287
      %s418 = smul.u32 8, %s26
      %p419 = scmp.lt.s32.totalorder %s25, 1
      %s420 = scalar_select %p419, %s25, 1
      %p421 = scmp.lt.s32.totalorder %s418, 7
      %s422 = scalar_select %p421, %s418, 7
      %s423 = smul.addr %s420, 8
      %s424 = sadd.s32 %s422, %s423
      %s425 = smul.addr %s424, 8
      %s426 = scalar_lea.vmem %s10, %s425
      %s427 = smul.u32 8, %s26
      %p428 = scmp.lt.s32.totalorder %s25, 1
      %s429 = scalar_select %p428, %s25, 1
      %p430 = scmp.lt.s32.totalorder %s427, 7
      %s431 = scalar_select %p430, %s427, 7
      %s432 = smul.addr %s429, 8
      %s433 = sadd.s32 %s431, %s432
      %s434 = smul.addr %s433, 8
      %s435 = scalar_lea.vmem %s0, %s434
      %s436 = smul.u32 8, %s26
      %s437 = smul.u32 8, %s26
      %p438 = scmp.lt.s32.totalorder %s25, 1
      %s439 = scalar_select %p438, %s25, 1
      %p440 = scmp.lt.s32.totalorder %s437, 7
      %s441 = scalar_select %p440, %s437, 7
      %s442 = smul.addr %s439, 8
      %s443 = sadd.s32 %s441, %s442
      %s444 = smul.addr %s443, 4
      %s445 = scalar_lea.vmem %s1, %s444
      %s446 = smul.u32 8, %s26
      %p447 = scmp.lt.s32.totalorder %s25, 1
      %s448 = scalar_select %p447, %s25, 1
      %s449 = scalar_lea.vmem %s2, %s448
      %p450 = scmp.lt.s32.totalorder %s25, 1
      %s451 = scalar_select %p450, %s25, 1
      %s452 = scalar_lea.vmem %s3, %s451
      %s453 = smul.u32 8, %s26
      %p454 = scmp.lt.s32.totalorder %s25, 1
      %s455 = scalar_select %p454, %s25, 1
      %p456 = scmp.lt.s32.totalorder %s453, 7
      %s457 = scalar_select %p456, %s453, 7
      %s458 = smul.addr %s455, 8
      %s459 = sadd.s32 %s457, %s458
      %s460 = smul.addr %s459, 8
      %s461 = scalar_lea.vmem %s10, %s460
      %s462 = smul.u32 8, %s26
      %v464 = vld [vmem:[%s435] sm:$0xff]
      %v465 = vld [vmem:[%s435 + $0x8] sm:$0xff]
      %v466 = vld [vmem:[%s435 + $0x10] sm:$0xff]
      %v467 = vld [vmem:[%s435 + $0x18] sm:$0xff]
      %v468 = vld [vmem:[%s435 + $0x20] sm:$0xff]
      %v469 = vld [vmem:[%s435 + $0x28] sm:$0xff]
      %v470 = vld [vmem:[%s435 + $0x30] sm:$0xff]
      %v471 = vld [vmem:[%s435 + $0x38] sm:$0xff]
      %v472 = vld [vmem:[%s445] sm:$0xf]
      %v473 = vld [vmem:[%s445 + $0x4] sm:$0xf]
      %v474 = vld [vmem:[%s445 + $0x8] sm:$0xf]
      %v475 = vld [vmem:[%s445 + $0xc] sm:$0xf]
      %v476 = vld [vmem:[%s445 + $0x10] sm:$0xf]
      %v477 = vld [vmem:[%s445 + $0x14] sm:$0xf]
      %v478 = vld [vmem:[%s445 + $0x18] sm:$0xf]
      %v479 = vld [vmem:[%s445 + $0x1c] sm:$0xf]
      %v480 = vld [vmem:[%s449] sm:$0x1]
      %v481 = vld [vmem:[%s452] sm:$0x1]
      %v482 = vld [vmem:[%s9] sm:$0x1]
      %v483 = vld [vmem:[%s4] sm:$0xf]
      %v484 = vld [vmem:[%s4 + $0x4] sm:$0xf]
      %v486 = vlaneseq
      %v487 = vshrl.u32 %v486, 7
      %v488 = vsub.s32 0, %v487
      %v489 = vrot.slane %v482, %v488
      %v499 = vunpack.c.l.b16 %v472
      %v500 = vunpack.c.l.b16 %v473
      %v501 = vunpack.c.l.b16 %v474
      %v502 = vunpack.c.l.b16 %v475
      %v503 = vunpack.c.l.b16 %v476
      %v504 = vunpack.c.l.b16 %v477
      %v505 = vunpack.c.l.b16 %v478
      %v506 = vunpack.c.l.b16 %v479
      %v507 = vpack.c.b16 %v500, %v499
      %v508 = vpack.c.b16 %v502, %v501
      %v509 = vpack.c.b16 %v504, %v503
      %v510 = vpack.c.b16 %v506, %v505
      %v513 = vunpack.c.l.b16 %v483
      %v514 = vunpack.c.l.b16 %v484
      %v515 = vpack.c.b16 %v514, %v513
      %vm517 = vcmask 130048
      %v519 = vsel %vm517, %v507, 0
      %v522 = vsel %vm517, %v508, 0
      %v525 = vsel %vm517, %v509, 0
      %v528 = vsel %vm517, %v510, 0
      %530 = vmatprep.subr.bf16.mxu0 0
      %531 = vmatpush1.bf16.msra.mxu0 %v515
      %532 = vmatprep.subr.bf16.mxu0 0
      %533 = vmatpush1.bf16.msra.mxu0 0
      %534 = vmatprep.subr.bf16.mxu0 0
      %535 = vmatpush1.bf16.msra.mxu0 0
      %536 = vmatprep.subr.bf16.mxu0 0
      %537 = vmatpush1.bf16.msra.mxu0 0
      %538 = vmatprep.subr.bf16.mxu0 0
      %539 = vmatpush1.bf16.msra.mxu0 0
      %540 = vmatprep.subr.bf16.mxu0 0
      %541 = vmatpush1.bf16.msra.mxu0 0
      %542 = vmatprep.subr.bf16.mxu0 0
      %543 = vmatpush1.bf16.msra.mxu0 0
      %544 = vmatprep.subr.bf16.mxu0 0
      %545 = vmatpush1.bf16.msra.mxu0 0
      %546 = vmatprep.subr.bf16.mxu0 0
      %547 = vmatpush1.bf16.msra.mxu0 0
      %548 = vmatprep.subr.bf16.mxu0 0
      %549 = vmatpush1.bf16.msra.mxu0 0
      %550 = vmatprep.subr.bf16.mxu0 0
      %551 = vmatpush1.bf16.msra.mxu0 0
      %552 = vmatprep.subr.bf16.mxu0 0
      %553 = vmatpush1.bf16.msra.mxu0 0
      %554 = vmatprep.subr.bf16.mxu0 0
      %555 = vmatpush1.bf16.msra.mxu0 0
      %556 = vmatprep.subr.bf16.mxu0 0
      %557 = vmatpush1.bf16.msra.mxu0 0
      %558 = vmatprep.subr.bf16.mxu0 0
      %559 = vmatpush1.bf16.msra.mxu0 0
      %560 = vmatprep.subr.bf16.mxu0 0
      %561 = vmatpush1.bf16.msra.mxu0 0
      %562 = vmatprep.mubr.bf16.mxu0 0
      %563 = vmatmul.mubr.bf16.gmra.mrb[0].mxu0 %v519
      %v564 = vpop.f32.mrb[0].mxu0
      %v565 = vadd.f32 %v489, %v564
      %v566 = vpop.f32.mrb[0].mxu0
      %v567 = vpop.f32.mrb[0].mxu0
      %v568 = vadd.f32 %v489, %v567
      %v569 = vpop.f32.mrb[0].mxu0
      %570 = vmatprep.mubr.bf16.mxu0 0
      %571 = vmatmul.mubr.bf16.gmra.mrb[0].mxu0 %v522
      %v572 = vpop.f32.mrb[0].mxu0
      %v573 = vadd.f32 %v489, %v572
      %v574 = vpop.f32.mrb[0].mxu0
      %v575 = vpop.f32.mrb[0].mxu0
      %v576 = vadd.f32 %v489, %v575
      %v577 = vpop.f32.mrb[0].mxu0
      %578 = vmatprep.mubr.bf16.mxu0 0
      %579 = vmatmul.mubr.bf16.gmra.mrb[0].mxu0 %v525
      %v580 = vpop.f32.mrb[0].mxu0
      %v581 = vadd.f32 %v489, %v580
      %v582 = vpop.f32.mrb[0].mxu0
      %v583 = vpop.f32.mrb[0].mxu0
      %v584 = vadd.f32 %v489, %v583
      %v585 = vpop.f32.mrb[0].mxu0
      %586 = vmatprep.mubr.bf16.mxu0 0
      %587 = vmatmul.mubr.bf16.gmra.mrb[0].mxu0 %v528
      %v588 = vpop.f32.mrb[0].mxu0
      %v589 = vadd.f32 %v489, %v588
      %v590 = vpop.f32.mrb[0].mxu0
      %v591 = vpop.f32.mrb[0].mxu0
      %v592 = vadd.f32 %v489, %v591
      %v593 = vpop.f32.mrb[0].mxu0
      %594 = vdwg.mxu0
      %v595 = vmax.f32 %v565, 0.0
      %v596 = vmax.f32 %v568, 0.0
      %v597 = vmax.f32 %v573, 0.0
      %v598 = vmax.f32 %v576, 0.0
      %v599 = vmax.f32 %v581, 0.0
      %v600 = vmax.f32 %v584, 0.0
      %v601 = vmax.f32 %v589, 0.0
      %v602 = vmax.f32 %v592, 0.0
      %v603 = vpack.c.bf16 %v596, %v595
      %v604 = vpack.c.bf16 %v598, %v597
      %v605 = vpack.c.bf16 %v600, %v599
      %v606 = vpack.c.bf16 %v602, %v601
      %v607 = vld [vmem:[%s5] sm:$0xf]
      %v608 = vld [vmem:[%s5 + $0x4] sm:$0xf]
      %v611 = vunpack.c.l.b16 %v607
      %v612 = vunpack.c.l.b16 %v608
      %v613 = vpack.c.b16 %v612, %v611
      %615 = vrot.lane.b32.xlu0 %v489, 112
      %v616 = vpop.permute.xlu0 %615
      %v619 = vsel %vm517, %v603, 0
      %v622 = vsel %vm517, %v604, 0
      %v625 = vsel %vm517, %v605, 0
      %v628 = vsel %vm517, %v606, 0
      %630 = vmatprep.subr.bf16.mxu0 0
      %631 = vmatpush1.bf16.msra.mxu0 %v613
      %632 = vmatprep.subr.bf16.mxu0 0
      %633 = vmatpush1.bf16.msra.mxu0 0
      %634 = vmatprep.subr.bf16.mxu0 0
      %635 = vmatpush1.bf16.msra.mxu0 0
      %636 = vmatprep.subr.bf16.mxu0 0
      %637 = vmatpush1.bf16.msra.mxu0 0
      %638 = vmatprep.subr.bf16.mxu0 0
      %639 = vmatpush1.bf16.msra.mxu0 0
      %640 = vmatprep.subr.bf16.mxu0 0
      %641 = vmatpush1.bf16.msra.mxu0 0
      %642 = vmatprep.subr.bf16.mxu0 0
      %643 = vmatpush1.bf16.msra.mxu0 0
      %644 = vmatprep.subr.bf16.mxu0 0
      %645 = vmatpush1.bf16.msra.mxu0 0
      %646 = vmatprep.subr.bf16.mxu0 0
      %647 = vmatpush1.bf16.msra.mxu0 0
      %648 = vmatprep.subr.bf16.mxu0 0
      %649 = vmatpush1.bf16.msra.mxu0 0
      %650 = vmatprep.subr.bf16.mxu0 0
      %651 = vmatpush1.bf16.msra.mxu0 0
      %652 = vmatprep.subr.bf16.mxu0 0
      %653 = vmatpush1.bf16.msra.mxu0 0
      %654 = vmatprep.subr.bf16.mxu0 0
      %655 = vmatpush1.bf16.msra.mxu0 0
      %656 = vmatprep.subr.bf16.mxu0 0
      %657 = vmatpush1.bf16.msra.mxu0 0
      %658 = vmatprep.subr.bf16.mxu0 0
      %659 = vmatpush1.bf16.msra.mxu0 0
      %660 = vmatprep.subr.bf16.mxu0 0
      %661 = vmatpush1.bf16.msra.mxu0 0
      %662 = vmatprep.mubr.bf16.mxu0 0
      %663 = vmatmul.mubr.bf16.gmra.mrb[0].mxu0 %v619
      %v664 = vpop.f32.mrb[0].mxu0
      %v665 = vadd.f32 %v616, %v664
      %v666 = vpop.f32.mrb[0].mxu0
      %v667 = vpop.f32.mrb[0].mxu0
      %v668 = vadd.f32 %v616, %v667
      %v669 = vpop.f32.mrb[0].mxu0
      %670 = vmatprep.mubr.bf16.mxu0 0
      %671 = vmatmul.mubr.bf16.gmra.mrb[0].mxu0 %v622
      %v672 = vpop.f32.mrb[0].mxu0
      %v673 = vadd.f32 %v616, %v672
      %v674 = vpop.f32.mrb[0].mxu0
      %v675 = vpop.f32.mrb[0].mxu0
      %v676 = vadd.f32 %v616, %v675
      %v677 = vpop.f32.mrb[0].mxu0
      %678 = vmatprep.mubr.bf16.mxu0 0
      %679 = vmatmul.mubr.bf16.gmra.mrb[0].mxu0 %v625
      %v680 = vpop.f32.mrb[0].mxu0
      %v681 = vadd.f32 %v616, %v680
      %v682 = vpop.f32.mrb[0].mxu0
      %v683 = vpop.f32.mrb[0].mxu0
      %v684 = vadd.f32 %v616, %v683
      %v685 = vpop.f32.mrb[0].mxu0
      %686 = vmatprep.mubr.bf16.mxu0 0
      %687 = vmatmul.mubr.bf16.gmra.mrb[0].mxu0 %v628
      %v688 = vpop.f32.mrb[0].mxu0
      %v689 = vadd.f32 %v616, %v688
      %v690 = vpop.f32.mrb[0].mxu0
      %v691 = vpop.f32.mrb[0].mxu0
      %v692 = vadd.f32 %v616, %v691
      %v693 = vpop.f32.mrb[0].mxu0
      %694 = vdwg.mxu0
      %v695 = vxor.u32 %v665, 2147483648
      %v696 = vxor.u32 %v668, 2147483648
      %v697 = vxor.u32 %v673, 2147483648
      %v698 = vxor.u32 %v676, 2147483648
      %v699 = vxor.u32 %v681, 2147483648
      %v700 = vxor.u32 %v684, 2147483648
      %v701 = vxor.u32 %v689, 2147483648
      %v702 = vxor.u32 %v692, 2147483648
      %v703 = vmul.f32 %v695, 1.442695
      %v704 = vpow.pop %v703
      %v705 = vmul.f32 %v696, 1.442695
      %v706 = vpow.pop %v705
      %v707 = vmul.f32 %v697, 1.442695
      %v708 = vpow.pop %v707
      %v709 = vmul.f32 %v698, 1.442695
      %v710 = vpow.pop %v709
      %v711 = vmul.f32 %v699, 1.442695
      %v712 = vpow.pop %v711
      %v713 = vmul.f32 %v700, 1.442695
      %v714 = vpow.pop %v713
      %v715 = vmul.f32 %v701, 1.442695
      %v716 = vpow.pop %v715
      %v717 = vmul.f32 %v702, 1.442695
      %v718 = vpow.pop %v717
      %v719 = vadd.f32 %v704, 1.0
      %v720 = vadd.f32 %v706, 1.0
      %v721 = vadd.f32 %v708, 1.0
      %v722 = vadd.f32 %v710, 1.0
      %v723 = vadd.f32 %v712, 1.0
      %v724 = vadd.f32 %v714, 1.0
      %v725 = vadd.f32 %v716, 1.0
      %v726 = vadd.f32 %v718, 1.0
      %v727 = vrcp.pop %v719
      %v728 = vmul.f32 1.0, %v727
      %v729 = vrcp.pop %v720
      %v730 = vmul.f32 1.0, %v729
      %v731 = vrcp.pop %v721
      %v732 = vmul.f32 1.0, %v731
      %v733 = vrcp.pop %v722
      %v734 = vmul.f32 1.0, %v733
      %v735 = vrcp.pop %v723
      %v736 = vmul.f32 1.0, %v735
      %v737 = vrcp.pop %v724
      %v738 = vmul.f32 1.0, %v737
      %v739 = vrcp.pop %v725
      %v740 = vmul.f32 1.0, %v739
      %v741 = vrcp.pop %v726
      %v742 = vmul.f32 1.0, %v741
      %744 = vset.pattern.permute.xlu0 0
      %745 = vperm.xlu0 %744, %v728
      %v746 = vpop.permute.xlu0 %745
      %749 = vset.pattern.permute.xlu0 0
      %750 = vperm.xlu0 %749, %v730
      %v751 = vpop.permute.xlu0 %750
      %754 = vset.pattern.permute.xlu0 0
      %755 = vperm.xlu0 %754, %v732
      %v756 = vpop.permute.xlu0 %755
      %759 = vset.pattern.permute.xlu0 0
      %760 = vperm.xlu0 %759, %v734
      %v761 = vpop.permute.xlu0 %760
      %764 = vset.pattern.permute.xlu0 0
      %765 = vperm.xlu0 %764, %v736
      %v766 = vpop.permute.xlu0 %765
      %769 = vset.pattern.permute.xlu0 0
      %770 = vperm.xlu0 %769, %v738
      %v771 = vpop.permute.xlu0 %770
      %774 = vset.pattern.permute.xlu0 0
      %775 = vperm.xlu0 %774, %v740
      %v776 = vpop.permute.xlu0 %775
      %779 = vset.pattern.permute.xlu0 0
      %780 = vperm.xlu0 %779, %v742
      %v781 = vpop.permute.xlu0 %780
      %v783 = vmul.f32 %v464, %v746
      %v784 = vmul.f32 %v465, %v751
      %v785 = vmul.f32 %v466, %v756
      %v786 = vmul.f32 %v467, %v761
      %v787 = vmul.f32 %v468, %v766
      %v788 = vmul.f32 %v469, %v771
      %v789 = vmul.f32 %v470, %v776
      %v790 = vmul.f32 %v471, %v781
      %v792 = vlaneseq
      %v793 = vshrl.u32 %v792, 7
      %v794 = vsub.s32 0, %v793
      %v795 = vrot.slane %v480, %v794
      %v797 = vmul.f32 %v783, %v795
      %v798 = vmul.f32 %v784, %v795
      %v799 = vmul.f32 %v785, %v795
      %v800 = vmul.f32 %v786, %v795
      %v801 = vmul.f32 %v787, %v795
      %v802 = vmul.f32 %v788, %v795
      %v803 = vmul.f32 %v789, %v795
      %v804 = vmul.f32 %v790, %v795
      %v805 = vpack.c.bf16 %v798, %v797
      %v806 = vpack.c.bf16 %v800, %v799
      %v807 = vpack.c.bf16 %v802, %v801
      %v808 = vpack.c.bf16 %v804, %v803
      %v809 = vld [vmem:[%s6] sm:$0xf]
      %v810 = vld [vmem:[%s6 + $0x4] sm:$0xf]
      %v812 = vlaneseq
      %v813 = vshrl.u32 %v812, 7
      %v814 = vsub.s32 0, %v813
      %v815 = vrot.slane %v481, %v814
      %v819 = vunpack.c.l.b16 %v809
      %v820 = vunpack.c.l.b16 %v810
      %v821 = vpack.c.b16 %v820, %v819
      %v824 = vsel %vm517, %v805, 0
      %v827 = vsel %vm517, %v806, 0
      %v830 = vsel %vm517, %v807, 0
      %v833 = vsel %vm517, %v808, 0
      %835 = vmatprep.subr.bf16.mxu0 0
      %836 = vmatpush1.bf16.msra.mxu0 %v821
      %837 = vmatprep.subr.bf16.mxu0 0
      %838 = vmatpush1.bf16.msra.mxu0 0
      %839 = vmatprep.subr.bf16.mxu0 0
      %840 = vmatpush1.bf16.msra.mxu0 0
      %841 = vmatprep.subr.bf16.mxu0 0
      %842 = vmatpush1.bf16.msra.mxu0 0
      %843 = vmatprep.subr.bf16.mxu0 0
      %844 = vmatpush1.bf16.msra.mxu0 0
      %845 = vmatprep.subr.bf16.mxu0 0
      %846 = vmatpush1.bf16.msra.mxu0 0
      %847 = vmatprep.subr.bf16.mxu0 0
      %848 = vmatpush1.bf16.msra.mxu0 0
      %849 = vmatprep.subr.bf16.mxu0 0
      %850 = vmatpush1.bf16.msra.mxu0 0
      %851 = vmatprep.subr.bf16.mxu0 0
      %852 = vmatpush1.bf16.msra.mxu0 0
      %853 = vmatprep.subr.bf16.mxu0 0
      %854 = vmatpush1.bf16.msra.mxu0 0
      %855 = vmatprep.subr.bf16.mxu0 0
      %856 = vmatpush1.bf16.msra.mxu0 0
      %857 = vmatprep.subr.bf16.mxu0 0
      %858 = vmatpush1.bf16.msra.mxu0 0
      %859 = vmatprep.subr.bf16.mxu0 0
      %860 = vmatpush1.bf16.msra.mxu0 0
      %861 = vmatprep.subr.bf16.mxu0 0
      %862 = vmatpush1.bf16.msra.mxu0 0
      %863 = vmatprep.subr.bf16.mxu0 0
      %864 = vmatpush1.bf16.msra.mxu0 0
      %865 = vmatprep.subr.bf16.mxu0 0
      %866 = vmatpush1.bf16.msra.mxu0 0
      %867 = vmatprep.mubr.bf16.mxu0 0
      %868 = vmatmul.mubr.bf16.gmra.mrb[0].mxu0 %v824
      %v869 = vpop.f32.mrb[0].mxu0
      %v870 = vadd.f32 %v815, %v869
      %v871 = vpop.f32.mrb[0].mxu0
      %v872 = vpop.f32.mrb[0].mxu0
      %v873 = vadd.f32 %v815, %v872
      %v874 = vpop.f32.mrb[0].mxu0
      %875 = vmatprep.mubr.bf16.mxu0 0
      %876 = vmatmul.mubr.bf16.gmra.mrb[0].mxu0 %v827
      %v877 = vpop.f32.mrb[0].mxu0
      %v878 = vadd.f32 %v815, %v877
      %v879 = vpop.f32.mrb[0].mxu0
      %v880 = vpop.f32.mrb[0].mxu0
      %v881 = vadd.f32 %v815, %v880
      %v882 = vpop.f32.mrb[0].mxu0
      %883 = vmatprep.mubr.bf16.mxu0 0
      %884 = vmatmul.mubr.bf16.gmra.mrb[0].mxu0 %v830
      %v885 = vpop.f32.mrb[0].mxu0
      %v886 = vadd.f32 %v815, %v885
      %v887 = vpop.f32.mrb[0].mxu0
      %v888 = vpop.f32.mrb[0].mxu0
      %v889 = vadd.f32 %v815, %v888
      %v890 = vpop.f32.mrb[0].mxu0
      %891 = vmatprep.mubr.bf16.mxu0 0
      %892 = vmatmul.mubr.bf16.gmra.mrb[0].mxu0 %v833
      %v893 = vpop.f32.mrb[0].mxu0
      %v894 = vadd.f32 %v815, %v893
      %v895 = vpop.f32.mrb[0].mxu0
      %v896 = vpop.f32.mrb[0].mxu0
      %v897 = vadd.f32 %v815, %v896
      %v898 = vpop.f32.mrb[0].mxu0
      %899 = vdwg.mxu0
      %v900 = vmax.f32 %v870, 0.0
      %v901 = vmax.f32 %v873, 0.0
      %v902 = vmax.f32 %v878, 0.0
      %v903 = vmax.f32 %v881, 0.0
      %v904 = vmax.f32 %v886, 0.0
      %v905 = vmax.f32 %v889, 0.0
      %v906 = vmax.f32 %v894, 0.0
      %v907 = vmax.f32 %v897, 0.0
      %v908 = vpack.c.bf16 %v901, %v900
      %v909 = vpack.c.bf16 %v903, %v902
      %v910 = vpack.c.bf16 %v905, %v904
      %v911 = vpack.c.bf16 %v907, %v906
      %v912 = vld [vmem:[%s7] sm:$0xf]
      %v913 = vld [vmem:[%s7 + $0x4] sm:$0xf]
      %v916 = vunpack.c.l.b16 %v912
      %v917 = vunpack.c.l.b16 %v913
      %v918 = vpack.c.b16 %v917, %v916
      %920 = vrot.lane.b32.xlu0 %v489, 110
      %v921 = vpop.permute.xlu0 %920
      %v924 = vsel %vm517, %v908, 0
      %v927 = vsel %vm517, %v909, 0
      %v930 = vsel %vm517, %v910, 0
      %v933 = vsel %vm517, %v911, 0
      %935 = vmatprep.subr.bf16.mxu0 0
      %936 = vmatpush1.bf16.msra.mxu0 %v918
      %937 = vmatprep.subr.bf16.mxu0 0
      %938 = vmatpush1.bf16.msra.mxu0 0
      %939 = vmatprep.subr.bf16.mxu0 0
      %940 = vmatpush1.bf16.msra.mxu0 0
      %941 = vmatprep.subr.bf16.mxu0 0
      %942 = vmatpush1.bf16.msra.mxu0 0
      %943 = vmatprep.subr.bf16.mxu0 0
      %944 = vmatpush1.bf16.msra.mxu0 0
      %945 = vmatprep.subr.bf16.mxu0 0
      %946 = vmatpush1.bf16.msra.mxu0 0
      %947 = vmatprep.subr.bf16.mxu0 0
      %948 = vmatpush1.bf16.msra.mxu0 0
      %949 = vmatprep.subr.bf16.mxu0 0
      %950 = vmatpush1.bf16.msra.mxu0 0
      %951 = vmatprep.subr.bf16.mxu0 0
      %952 = vmatpush1.bf16.msra.mxu0 0
      %953 = vmatprep.subr.bf16.mxu0 0
      %954 = vmatpush1.bf16.msra.mxu0 0
      %955 = vmatprep.subr.bf16.mxu0 0
      %956 = vmatpush1.bf16.msra.mxu0 0
      %957 = vmatprep.subr.bf16.mxu0 0
      %958 = vmatpush1.bf16.msra.mxu0 0
      %959 = vmatprep.subr.bf16.mxu0 0
      %960 = vmatpush1.bf16.msra.mxu0 0
      %961 = vmatprep.subr.bf16.mxu0 0
      %962 = vmatpush1.bf16.msra.mxu0 0
      %963 = vmatprep.subr.bf16.mxu0 0
      %964 = vmatpush1.bf16.msra.mxu0 0
      %965 = vmatprep.subr.bf16.mxu0 0
      %966 = vmatpush1.bf16.msra.mxu0 0
      %967 = vmatprep.mubr.bf16.mxu0 0
      %968 = vmatmul.mubr.bf16.gmra.mrb[0].mxu0 %v924
      %v969 = vpop.f32.mrb[0].mxu0
      %v970 = vadd.f32 %v921, %v969
      %v971 = vpop.f32.mrb[0].mxu0
      %v972 = vpop.f32.mrb[0].mxu0
      %v973 = vadd.f32 %v921, %v972
      %v974 = vpop.f32.mrb[0].mxu0
      %975 = vmatprep.mubr.bf16.mxu0 0
      %976 = vmatmul.mubr.bf16.gmra.mrb[0].mxu0 %v927
      %v977 = vpop.f32.mrb[0].mxu0
      %v978 = vadd.f32 %v921, %v977
      %v979 = vpop.f32.mrb[0].mxu0
      %v980 = vpop.f32.mrb[0].mxu0
      %v981 = vadd.f32 %v921, %v980
      %v982 = vpop.f32.mrb[0].mxu0
      %983 = vmatprep.mubr.bf16.mxu0 0
      %984 = vmatmul.mubr.bf16.gmra.mrb[0].mxu0 %v930
      %v985 = vpop.f32.mrb[0].mxu0
      %v986 = vadd.f32 %v921, %v985
      %v987 = vpop.f32.mrb[0].mxu0
      %v988 = vpop.f32.mrb[0].mxu0
      %v989 = vadd.f32 %v921, %v988
      %v990 = vpop.f32.mrb[0].mxu0
      %991 = vmatprep.mubr.bf16.mxu0 0
      %992 = vmatmul.mubr.bf16.gmra.mrb[0].mxu0 %v933
      %v993 = vpop.f32.mrb[0].mxu0
      %v994 = vadd.f32 %v921, %v993
      %v995 = vpop.f32.mrb[0].mxu0
      %v996 = vpop.f32.mrb[0].mxu0
      %v997 = vadd.f32 %v921, %v996
      %v998 = vpop.f32.mrb[0].mxu0
      %999 = vdwg.mxu0
      %v1000 = vmax.f32 %v970, 0.0
      %v1001 = vmax.f32 %v973, 0.0
      %v1002 = vmax.f32 %v978, 0.0
      %v1003 = vmax.f32 %v981, 0.0
      %v1004 = vmax.f32 %v986, 0.0
      %v1005 = vmax.f32 %v989, 0.0
      %v1006 = vmax.f32 %v994, 0.0
      %v1007 = vmax.f32 %v997, 0.0
      %v1008 = vpack.c.bf16 %v1001, %v1000
      %v1009 = vpack.c.bf16 %v1003, %v1002
      %v1010 = vpack.c.bf16 %v1005, %v1004
      %v1011 = vpack.c.bf16 %v1007, %v1006
      %v1012 = vld [vmem:[%s8] sm:$0xf]
      %1013 = vrot.lane.b32.xlu0 %v489, 102
      %v1014 = vpop.permute.xlu0 %1013
      %vm1016 = vcmask 64512
      %v1018 = vsel %vm1016, %v1008, 0
      %v1021 = vsel %vm1016, %v1009, 0
      %v1024 = vsel %vm1016, %v1010, 0
      %v1027 = vsel %vm1016, %v1011, 0
      %vm1029 = vcmask 1043456
      %v1031 = vsel %vm1029, %v1012, 0
      %1033 = vmatprep.subr.bf16.mxu0 0
      %1034 = vmatpush1.bf16.msra.mxu0 %v1031
      %1035 = vmatprep.subr.bf16.mxu0 0
      %1036 = vmatpush1.bf16.msra.mxu0 0
      %1037 = vmatprep.subr.bf16.mxu0 0
      %1038 = vmatpush1.bf16.msra.mxu0 0
      %1039 = vmatprep.subr.bf16.mxu0 0
      %1040 = vmatpush1.bf16.msra.mxu0 0
      %1041 = vmatprep.subr.bf16.mxu0 0
      %1042 = vmatpush1.bf16.msra.mxu0 0
      %1043 = vmatprep.subr.bf16.mxu0 0
      %1044 = vmatpush1.bf16.msra.mxu0 0
      %1045 = vmatprep.subr.bf16.mxu0 0
      %1046 = vmatpush1.bf16.msra.mxu0 0
      %1047 = vmatprep.subr.bf16.mxu0 0
      %1048 = vmatpush1.bf16.msra.mxu0 0
      %1049 = vmatprep.subr.bf16.mxu0 0
      %1050 = vmatpush1.bf16.msra.mxu0 0
      %1051 = vmatprep.subr.bf16.mxu0 0
      %1052 = vmatpush1.bf16.msra.mxu0 0
      %1053 = vmatprep.subr.bf16.mxu0 0
      %1054 = vmatpush1.bf16.msra.mxu0 0
      %1055 = vmatprep.subr.bf16.mxu0 0
      %1056 = vmatpush1.bf16.msra.mxu0 0
      %1057 = vmatprep.subr.bf16.mxu0 0
      %1058 = vmatpush1.bf16.msra.mxu0 0
      %1059 = vmatprep.subr.bf16.mxu0 0
      %1060 = vmatpush1.bf16.msra.mxu0 0
      %1061 = vmatprep.subr.bf16.mxu0 0
      %1062 = vmatpush1.bf16.msra.mxu0 0
      %1063 = vmatprep.subr.bf16.mxu0 0
      %1064 = vmatpush1.bf16.msra.mxu0 0
      %1065 = vmatprep.mubr.bf16.mxu0 0
      %1066 = vmatmul.mubr.bf16.gmra.mrb[0].mxu0 %v1018
      %v1067 = vpop.f32.mrb[0].mxu0
      %v1068 = vadd.f32 %v1014, %v1067
      %v1069 = vpop.f32.mrb[0].mxu0
      %v1070 = vpop.f32.mrb[0].mxu0
      %v1071 = vadd.f32 %v1014, %v1070
      %v1072 = vpop.f32.mrb[0].mxu0
      %1073 = vmatprep.mubr.bf16.mxu0 0
      %1074 = vmatmul.mubr.bf16.gmra.mrb[0].mxu0 %v1021
      %v1075 = vpop.f32.mrb[0].mxu0
      %v1076 = vadd.f32 %v1014, %v1075
      %v1077 = vpop.f32.mrb[0].mxu0
      %v1078 = vpop.f32.mrb[0].mxu0
      %v1079 = vadd.f32 %v1014, %v1078
      %v1080 = vpop.f32.mrb[0].mxu0
      %1081 = vmatprep.mubr.bf16.mxu0 0
      %1082 = vmatmul.mubr.bf16.gmra.mrb[0].mxu0 %v1024
      %v1083 = vpop.f32.mrb[0].mxu0
      %v1084 = vadd.f32 %v1014, %v1083
      %v1085 = vpop.f32.mrb[0].mxu0
      %v1086 = vpop.f32.mrb[0].mxu0
      %v1087 = vadd.f32 %v1014, %v1086
      %v1088 = vpop.f32.mrb[0].mxu0
      %1089 = vmatprep.mubr.bf16.mxu0 0
      %1090 = vmatmul.mubr.bf16.gmra.mrb[0].mxu0 %v1027
      %v1091 = vpop.f32.mrb[0].mxu0
      %v1092 = vadd.f32 %v1014, %v1091
      %v1093 = vpop.f32.mrb[0].mxu0
      %v1094 = vpop.f32.mrb[0].mxu0
      %v1095 = vadd.f32 %v1014, %v1094
      %v1096 = vpop.f32.mrb[0].mxu0
      %1097 = vdwg.mxu0
      %v1098 = vmax.f32 %v1068, 0.0
      %v1099 = vmax.f32 %v1071, 0.0
      %v1100 = vmax.f32 %v1076, 0.0
      %v1101 = vmax.f32 %v1079, 0.0
      %v1102 = vmax.f32 %v1084, 0.0
      %v1103 = vmax.f32 %v1087, 0.0
      %v1104 = vmax.f32 %v1092, 0.0
      %v1105 = vmax.f32 %v1095, 0.0
      %v1106 = vlaneseq
      %v1107 = vand.u32 %v1106, 127
      %vm1108 = vcmp.eq.s32.totalorder %v1107, 15
      %1109 = vset.pattern.permute.xlu0 1
      %1110 = vperm.xlu0 %1109, %v728
      %v1111 = vpop.permute.xlu0 %1110
      %1113 = vset.pattern.permute.xlu0 1
      %1114 = vperm.xlu0 %1113, %v730
      %v1115 = vpop.permute.xlu0 %1114
      %1117 = vset.pattern.permute.xlu0 1
      %1118 = vperm.xlu0 %1117, %v732
      %v1119 = vpop.permute.xlu0 %1118
      %1121 = vset.pattern.permute.xlu0 1
      %1122 = vperm.xlu0 %1121, %v734
      %v1123 = vpop.permute.xlu0 %1122
      %1125 = vset.pattern.permute.xlu0 1
      %1126 = vperm.xlu0 %1125, %v736
      %v1127 = vpop.permute.xlu0 %1126
      %1129 = vset.pattern.permute.xlu0 1
      %1130 = vperm.xlu0 %1129, %v738
      %v1131 = vpop.permute.xlu0 %1130
      %1133 = vset.pattern.permute.xlu0 1
      %1134 = vperm.xlu0 %1133, %v740
      %v1135 = vpop.permute.xlu0 %1134
      %1137 = vset.pattern.permute.xlu0 1
      %1138 = vperm.xlu0 %1137, %v742
      %v1139 = vpop.permute.xlu0 %1138
      %v1141 = vsel %vm1108, %v1111, %v1098
      %v1142 = vsel %vm1108, %v1115, %v1099
      %v1143 = vsel %vm1108, %v1119, %v1100
      %v1144 = vsel %vm1108, %v1123, %v1101
      %v1145 = vsel %vm1108, %v1127, %v1102
      %v1146 = vsel %vm1108, %v1131, %v1103
      %v1147 = vsel %vm1108, %v1135, %v1104
      %v1148 = vsel %vm1108, %v1139, %v1105
      %v1149 = vadd.f32 %v464, %v1141
      %v1150 = vadd.f32 %v465, %v1142
      %v1151 = vadd.f32 %v466, %v1143
      %v1152 = vadd.f32 %v467, %v1144
      %v1153 = vadd.f32 %v468, %v1145
      %v1154 = vadd.f32 %v469, %v1146
      %v1155 = vadd.f32 %v470, %v1147
      %v1156 = vadd.f32 %v471, %v1148
      %1157 = vst.msk [vmem:[%s461] sm:$0xff] %vm517, %v1149
      %1158 = vst.msk [vmem:[%s461 + $0x8] sm:$0xff] %vm517, %v1150
      %1159 = vst.msk [vmem:[%s461 + $0x10] sm:$0xff] %vm517, %v1151
      %1160 = vst.msk [vmem:[%s461 + $0x18] sm:$0xff] %vm517, %v1152
      %1161 = vst.msk [vmem:[%s461 + $0x20] sm:$0xff] %vm517, %v1153
      %1162 = vst.msk [vmem:[%s461 + $0x28] sm:$0xff] %vm517, %v1154
      %1163 = vst.msk [vmem:[%s461 + $0x30] sm:$0xff] %vm517, %v1155
      %1164 = vst.msk [vmem:[%s461 + $0x38] sm:$0xff] %vm517, %v1156
      %s1165 = smul.u32 8, %s26
      %p1166 = scmp.lt.s32.totalorder %s25, 1
      %s1167 = scalar_select %p1166, %s25, 1
      %p1168 = scmp.lt.s32.totalorder %s1165, 7
      %s1169 = scalar_select %p1168, %s1165, 7
      %s1170 = smul.addr %s1167, 8
      %s1171 = sadd.s32 %s1169, %s1170
      %s1172 = smul.addr %s1171, 8
      %s1173 = scalar_lea.vmem %s10, %s1172
      // Predicated region
      $region61: #{attention_layer_nchw.1} parent=59 // pred_check
        %p1174 = pneg %p287
      $region62: #{attention_layer_nchw.1} parent=59 // pred_check_branch
        %1176 = sbr.rel (%p1174) target = $region64
      $region63: #{attention_layer_nchw.1} parent=59 // pred_region
        %s1177 = smul.u32 8, %s26
      $region64: #{attention_layer_nchw.1} parent=59 // pred_fallthru
        _
    $region60: #{attention_layer_nchw.1} parent=5 // pred_fallthru
      _
    %p1178 = scmp.le.s32.totalorder 2, %s16
    // Predicated region
    $region65: #{attention_layer_nchw.1} parent=5 // pred_check
      %p1179 = pneg %p1178
    $region66: #{attention_layer_nchw.1} parent=5 // pred_check_branch
      %1181 = sbr.rel (%p1179) target = $region68
    $region67: #{attention_layer_nchw.1} parent=5 // pred_region
      %s1182 = ssub.s32 %s16, 2
      // Predicated region
      $region69: #{attention_layer_nchw.1} parent=67 // pred_check
        %p1183 = pneg %p293
      $region70: #{attention_layer_nchw.1} parent=67 // pred_check_branch
        %1185 = sbr.rel (%p1183) target = $region72
      $region71: #{attention_layer_nchw.1} parent=67 // pred_region
        %s1186 = smul.u32 8, %s28
        %p1187 = scmp.lt.s32.totalorder %s27, 1
        %s1188 = scalar_select %p1187, %s27, 1
        %p1189 = scmp.lt.s32.totalorder %s1186, 7
        %s1190 = scalar_select %p1189, %s1186, 7
        %s1191 = smul.addr %s1188, 8
        %s1192 = sadd.s32 %s1190, %s1191
        %s1193 = smul.addr %s1192, 8
        %s1194 = scalar_lea.vmem %s10, %s1193
      $region72: #{attention_layer_nchw.1} parent=67 // pred_fallthru
        _
    $region68: #{attention_layer_nchw.1} parent=5 // pred_fallthru
      _
  $region6: #{attention_layer_nchw.1} parent=0 // loop_footer
    %s20 = sadd.s32 1, %s16
  $region7: #{attention_layer_nchw.1} parent=0 // loop_footer_branch
    %15 = sbr.rel target = $region3
  $region8: #{attention_layer_nchw.1} parent=0 // loop_exit
    _

</llo_original>
